<compile_context>
chip_gen: v5e
topology: v5e:2x2
jax: 0.10.0
libtpu: 0.0.40
codegen_flags: <defaults>
</compile_context>

<pallas_src>
import jax
import jax.numpy as jnp
from jax.experimental import pallas as pl
from jax.experimental.pallas import tpu as pltpu


def _round_up(x, m):
    return ((x + m - 1) // m) * m


def _sublane_multiple(dtype):
    # Sublane packing requirement for the second-to-last block dim:
    # 8 for f32, 16 for bf16, 32 for int8/fp8.
    return max(8, 32 // jnp.dtype(dtype).itemsize)


def _vmem_capacity_bytes():
    # Per-core VMEM: 128 MiB on v5e/v6e, 64 MiB on v7x. Query the device and
    # fall back to the conservative v7x figure if the query is unavailable.
    try:
        return int(pltpu.get_tpu_info().vmem_capacity_bytes)
    except Exception:
        return 64 * 1024 * 1024


def _project_kernel(x_ref, w_ref, b_ref, o_ref):
    """nk == 1 fast path: single MXU matmul per (tm, tn) tile, bias fused."""
    y = jnp.dot(x_ref[...], w_ref[...], preferred_element_type=jnp.float32)
    o_ref[...] = (y + b_ref[...].astype(jnp.float32)).astype(o_ref.dtype)


def _project_kernel_ktiled(x_ref, w_ref, b_ref, o_ref, acc_ref):
    """K-tiled path: f32 VMEM accumulator resident across the K axis."""
    k = pl.program_id(2)

    @pl.when(k == 0)
    def _():
        acc_ref[...] = jnp.zeros_like(acc_ref)

    acc_ref[...] += jnp.dot(x_ref[...], w_ref[...],
                            preferred_element_type=jnp.float32)

    @pl.when(k == pl.num_programs(2) - 1)
    def _():
        o_ref[...] = (acc_ref[...] + b_ref[...].astype(jnp.float32)).astype(o_ref.dtype)


def prepare_weight(weight_vh):
    """One-time conversion of a PyTorch nn.Linear weight [V, H] to the [H, V]
    layout the kernel consumes. Do this once, outside the hot path."""
    return jnp.asarray(weight_vh).T


def project(x, weight_hv, bias, *, tm=None, tn=None, tk=None, vmem_limit_bytes=None):
    """Pallas equivalent of torch.nn.Linear(hidden_size, vocab_size)(x).

    x:         [..., H]
    weight_hv: [H, V]  (transposed PyTorch weight; see `prepare_weight`)
    bias:      [V]
    returns:   [..., V]
    """
    H, V = weight_hv.shape
    assert x.shape[-1] == H, "weight_hv must be [hidden_size, vocab_size]"
    lead = x.shape[:-1]

    x2d = x.reshape(-1, H)
    M = x2d.shape[0]
    b2d = bias.reshape(1, V)

    x_it = x2d.dtype.itemsize
    w_it = weight_hv.dtype.itemsize
    b_it = b2d.dtype.itemsize
    o_it = jnp.dtype(x.dtype).itemsize

    # ---- generation-aware tile selection ------------------------------------
    budget = int(0.8 * _vmem_capacity_bytes())
    sub = _sublane_multiple(x2d.dtype)

    if tm is None:
        tm = min(256, _round_up(M, sub))
    tm = _round_up(tm, sub)

    def working_set(tk_, tn_):
        # double-buffered blocks (+ f32 accumulator only when K-tiled)
        ws = 2 * (tm * tk_ * x_it + tk_ * tn_ * w_it + tn_ * b_it + tm * tn_ * o_it)
        if tk_ != H:
            ws += tm * tn_ * 4
        return ws

    v_cap = _round_up(V, 128)
    if tn is not None:
        tn_cands = [_round_up(tn, 128)]
    else:
        tn_cands = [c for c in (2048, 1024, 512, 256, 128) if c <= v_cap] or [128]

    if tk is not None:
        assert tk == H or H % tk == 0, "tk must divide H (reduction dim must not be ragged)"
        tk_cands = [tk]
    else:
        # Prefer full-H blocks (weight streamed exactly once); only K-tile when
        # VMEM forces it, using 128-aligned divisors of H so K is never ragged.
        tk_cands = [H] + [c for c in (8192, 4096, 2048, 1024, 512, 256, 128)
                          if c < H and H % c == 0]

    tk_sel, tn_sel = tk_cands[-1], tn_cands[-1]        # best-effort fallback
    found = False
    for tk_ in tk_cands:
        for tn_ in tn_cands:
            if working_set(tk_, tn_) <= budget:
                tk_sel, tn_sel = tk_, tn_
                found = True
                break
        if found:
            break
    tk, tn = tk_sel, tn_sel

    nj, ni, nk = pl.cdiv(V, tn), pl.cdiv(M, tm), pl.cdiv(H, tk)

    if vmem_limit_bytes is None:
        vmem_limit_bytes = min(
            max(int(1.5 * working_set(tk, tn)) + (2 << 20), 32 << 20),
            int(0.9 * _vmem_capacity_bytes()),   # leave headroom for Mosaic scratch
        )

    cost = pl.CostEstimate(
        flops=2 * M * V * H,
        transcendentals=0,
        bytes_accessed=M * H * x_it + H * V * w_it + V * b_it + M * V * o_it,
    )

    if nk == 1:
        grid = (nj, ni)
        in_specs = [
            pl.BlockSpec((tm, tk), lambda j, i: (i, 0)),   # activations
            pl.BlockSpec((tk, tn), lambda j, i: (0, j)),   # weight [H, V]
            pl.BlockSpec((1, tn), lambda j, i: (0, j)),    # bias row
        ]
        out_specs = pl.BlockSpec((tm, tn), lambda j, i: (i, j))
        scratch_shapes = []
        kernel = _project_kernel
        dim_sem = ("parallel", "parallel")
    else:
        grid = (nj, ni, nk)
        in_specs = [
            pl.BlockSpec((tm, tk), lambda j, i, k: (i, k)),
            pl.BlockSpec((tk, tn), lambda j, i, k: (k, j)),
            pl.BlockSpec((1, tn), lambda j, i, k: (0, j)),
        ]
        out_specs = pl.BlockSpec((tm, tn), lambda j, i, k: (i, j))
        scratch_shapes = [pltpu.VMEM((tm, tn), jnp.float32)]
        kernel = _project_kernel_ktiled
        dim_sem = ("parallel", "parallel", "arbitrary")

    out2d = pl.pallas_call(
        kernel,
        out_shape=jax.ShapeDtypeStruct((M, V), x.dtype),
        grid_spec=pltpu.PrefetchScalarGridSpec(
            num_scalar_prefetch=0,
            grid=grid,
            in_specs=in_specs,
            out_specs=out_specs,
            scratch_shapes=scratch_shapes,
        ),
        compiler_params=pltpu.CompilerParams(
            dimension_semantics=dim_sem,
            vmem_limit_bytes=int(vmem_limit_bytes),
        ),
        cost_estimate=cost,
    )(x2d, weight_hv, b2d)

    return out2d.reshape(*lead, V)


if __name__ == "__main__":
    # Small shapes consistent with the module: hidden=32, vocab=128, batch=2, seq=8.
    B, S, H, Vocab = 2, 8, 32, 128

    key = jax.random.PRNGKey(0)
    kx, kw, kb = jax.random.split(key, 3)

    x = jax.random.normal(kx, (B, S, H), dtype=jnp.float32)

    # PyTorch nn.Linear default init: weight, bias ~ U(-1/sqrt(H), 1/sqrt(H)).
    bound = 1.0 / (H ** 0.5)
    weight_vh = jax.random.uniform(kw, (Vocab, H), jnp.float32, -bound, bound)  # [V, H]
    bias = jax.random.uniform(kb, (Vocab,), jnp.float32, -bound, bound)

    # One-time layout conversion (outside the hot path): [V, H] -> [H, V].
    weight_hv = prepare_weight(weight_vh)

    y = project(x, weight_hv, bias)
    jax.block_until_ready(y)

    # Cross-check against the plain JAX reference of nn.Linear forward.
    y_ref = x @ weight_vh.T + bias
    assert y.shape == (B, S, Vocab)
    assert jnp.allclose(y, y_ref, atol=1e-5, rtol=1e-5)

    print("KERNEL_OK")
</pallas_src>

<mosaic_0001>
module attributes {stable_mosaic.version = 11 : i64} {
  func.func @_project_kernel(%arg0: i32, %arg1: i32, %arg2: memref<16x32xf32, #tpu.memory_space<vmem>>, %arg3: memref<32x128xf32, #tpu.memory_space<vmem>>, %arg4: memref<1x128xf32, #tpu.memory_space<vmem>>, %arg5: memref<16x128xf32, #tpu.memory_space<vmem>>) attributes {dimension_semantics = [#tpu.dimension_semantics<parallel>, #tpu.dimension_semantics<parallel>], iteration_bounds = array<i64: 1, 1>, scalar_prefetch = 0 : i64, scratch_operands = 0 : i64, tpu.core_type = #tpu.core_type<tc>, window_params = [{transform_indices = @transform_0, window_bounds = array<i64: 16, 32>}, {transform_indices = @transform_1, window_bounds = array<i64: 32, 128>}, {transform_indices = @transform_2, window_bounds = array<i64: 1, 128>}, {transform_indices = @transform_3, window_bounds = array<i64: 16, 128>}]} {
    %c0 = arith.constant 0 : index
    %c0_0 = arith.constant 0 : index
    %0 = vector.load %arg2[%c0, %c0_0] : memref<16x32xf32, #tpu.memory_space<vmem>>, vector<16x32xf32>
    %c0_1 = arith.constant 0 : index
    %c0_2 = arith.constant 0 : index
    %1 = vector.load %arg3[%c0_1, %c0_2] : memref<32x128xf32, #tpu.memory_space<vmem>>, vector<32x128xf32>
    %cst = arith.constant dense<0.000000e+00> : vector<16x128xf32>
    %2 = tpu.matmul %0, %1, %cst {dimension_numbers = #tpu.dot_dimension_numbers<[1], [0], [0], [1], [0, 0, 1, 1], [], []>} : vector<16x32xf32>, vector<32x128xf32>, vector<16x128xf32> -> vector<16x128xf32>
    %c0_3 = arith.constant 0 : index
    %c0_4 = arith.constant 0 : index
    %3 = vector.load %arg4[%c0_3, %c0_4] : memref<1x128xf32, #tpu.memory_space<vmem>>, vector<1x128xf32>
    %4 = vector.broadcast %3 : vector<1x128xf32> to vector<16x128xf32>
    %5 = arith.addf %2, %4 : vector<16x128xf32>
    %c0_5 = arith.constant 0 : index
    %c0_6 = arith.constant 0 : index
    %6 = vector.load %arg5[%c0_5, %c0_6] : memref<16x128xf32, #tpu.memory_space<vmem>>, vector<16x128xf32>
    tpu.vector_store %arg5[%c0_5, %c0_6], %5 {strides = array<i32>} : memref<16x128xf32, #tpu.memory_space<vmem>>, vector<16x128xf32>,
    return
  }
  func.func @transform_0(%arg0: i32, %arg1: i32) -> (i32, i32) {
    %c0_i32 = arith.constant 0 : i32
    %c0_i32_0 = arith.constant 0 : i32
    return %arg1, %c0_i32 : i32, i32
  }
  func.func @transform_1(%arg0: i32, %arg1: i32) -> (i32, i32) {
    %c0_i32 = arith.constant 0 : i32
    %c0_i32_0 = arith.constant 0 : i32
    return %c0_i32, %arg0 : i32, i32
  }
  func.func @transform_2(%arg0: i32, %arg1: i32) -> (i32, i32) {
    %c0_i32 = arith.constant 0 : i32
    %c0_i32_0 = arith.constant 0 : i32
    return %c0_i32, %arg0 : i32, i32
  }
  func.func @transform_3(%arg0: i32, %arg1: i32) -> (i32, i32) {
    %c0_i32 = arith.constant 0 : i32
    return %arg1, %arg0 : i32, i32
  }
}

</mosaic_0001>

<llo_original>
// kernel: tpu_custom_call.1
$region0: #{tpu_custom_call.1}
  #allocation0 [shape = 'u32[]', space=smem, size = 0x4, offset = 0x4, fixed_abs, tag = 'smem constant byte address 0x4 - core index']
  #allocation1 [shape = 'u32[72,128]{1,0:T(1,128)}', space=vmem, size = 0x9000, scoped, tag = 'internal scratch']
  %s0 = inlined_call_operand.hbm [shape: f32[16,32], index: 0, kind: input, shape index: {}]
  %s1 = inlined_call_operand.hbm [shape: f32[32,128], index: 1, kind: input, shape index: {}]
  %s2 = inlined_call_operand.vmem [shape: f32[1,128], index: 2, kind: input, shape index: {}]
  %s3 = inlined_call_operand.hbm [shape: f32[16,128], index: 3, kind: output, shape index: {}]
  %s4 = sld [smem:[#allocation0]]
  $region30: #{tpu_custom_call.1} parent=0
    _
  %s6 = ssub.s32 1, %s4
  %s7 = scalar_select 0, %s6, %s4
  $region1: #{tpu_custom_call.1} parent=0
    #allocation2 [shape = 'u8[8192]{0}', space=vmem, size = 0x2000, scoped, tag = 'input window, operand 0, single buffered']
    #allocation3 [shape = 's32[1]{0}', space=sflag, size = 0x4, scoped, tag = 'scoped memory for tpu_custom_call.1']
    #allocation4 [shape = 's32[1]{0}', space=sflag, size = 0x4, scoped, tag = 'scoped memory for tpu_custom_call.1']
    #allocation5 [shape = 'u8[16384]{0}', space=vmem, size = 0x4000, scoped, tag = 'input window, operand 1, single buffered']
    #allocation6 [shape = 's32[1]{0}', space=sflag, size = 0x4, scoped, tag = 'scoped memory for tpu_custom_call.1']
    #allocation7 [shape = 'u8[8192]{0}', space=vmem, size = 0x2000, scoped, tag = 'output window, operand 0, single buffered']
    %8 = vsyncpa [#allocation3], 0
    %9 = vsyncpa [#allocation6], 0
    %10 = vsyncpa [#allocation4], 0
    // Predicated region
    $region2: #{tpu_custom_call.1} parent=1 // pred_check
      _
    $region3: #{tpu_custom_call.1} parent=1 // pred_check_branch
      %12 = sbr.rel (0) target = $region5
    $region4: #{tpu_custom_call.1} parent=1 // pred_region
      %14 = vsyncadd [#allocation3], 0
      %s15 = sshll.u32 %s0, 4
      %s16 = int_to_ptr.hbm [resolvable:$true] %s15
      %s17 = sshll.u32 [#allocation2], 4
      %s18 = int_to_ptr.vmem [resolvable:$true] %s17
      %23 = dma.hbm_to_vmem [thread:$0]  %s16, 256, %s18, [#allocation3], 128, 128, 8
    $region5: #{tpu_custom_call.1} parent=1 // pred_fallthru
      _
    // Predicated region
    $region6: #{tpu_custom_call.1} parent=1 // pred_check
      _
    $region7: #{tpu_custom_call.1} parent=1 // pred_check_branch
      %25 = sbr.rel (0) target = $region9
    $region8: #{tpu_custom_call.1} parent=1 // pred_region
      %27 = vsyncadd [#allocation6], 0
      %s28 = sshll.u32 %s1, 4
      %s29 = int_to_ptr.hbm [resolvable:$true] %s28
      %s30 = sshll.u32 [#allocation5], 4
      %s31 = int_to_ptr.vmem [resolvable:$true] %s30
      %36 = dma.hbm_to_vmem [thread:$0]  %s29, 512, %s31, [#allocation6], 128, 128, 8
    $region9: #{tpu_custom_call.1} parent=1 // pred_fallthru
      _
    // Predicated region
    $region10: #{tpu_custom_call.1} parent=1 // pred_check
      _
    $region11: #{tpu_custom_call.1} parent=1 // pred_check_branch
      %38 = sbr.rel (0) target = $region13
    $region12: #{tpu_custom_call.1} parent=1 // pred_region
      _
    $region13: #{tpu_custom_call.1} parent=1 // pred_fallthru
      _
    // Predicated region
    $region14: #{tpu_custom_call.1} parent=1 // pred_check
      _
    $region15: #{tpu_custom_call.1} parent=1 // pred_check_branch
      %40 = sbr.rel (0) target = $region17
    $region16: #{tpu_custom_call.1} parent=1 // pred_region
      %42 = dma.done [#allocation3], 256
    $region17: #{tpu_custom_call.1} parent=1 // pred_fallthru
      _
    // Predicated region
    $region18: #{tpu_custom_call.1} parent=1 // pred_check
      _
    $region19: #{tpu_custom_call.1} parent=1 // pred_check_branch
      %44 = sbr.rel (0) target = $region21
    $region20: #{tpu_custom_call.1} parent=1 // pred_region
      %46 = dma.done [#allocation6], 512
    $region21: #{tpu_custom_call.1} parent=1 // pred_fallthru
      _
    %v47 = vld [vmem:[#allocation2] sm:$0xff]
    %v48 = vld [vmem:[#allocation2 + $0x8] sm:$0xff]
    %v49 = vld [vmem:[#allocation5] sm:$0xff]
    %v50 = vld [vmem:[#allocation5 + $0x8] sm:$0xff]
    %v51 = vld [vmem:[#allocation5 + $0x10] sm:$0xff]
    %v52 = vld [vmem:[#allocation5 + $0x18] sm:$0xff]
    %v53 = vld [vmem:[%s2] sm:$0x1]
    %v55 = vperm.slane %v53, 0
    %vm57 = vcmask 261120
    %v59 = vsel %vm57, %v47, 0
    %v62 = vsel %vm57, %v48, 0
    %64 = vmatpush.msra.mxu0 0.0
    %65 = vmatpush.msra.mxu0 0.0
    %66 = vmatpush.msra.mxu0 0.0
    %67 = vmatpush.msra.mxu0 0.0
    %68 = vmatpush.msra.mxu0 0.0
    %69 = vmatpush.msra.mxu0 0.0
    %70 = vmatpush.msra.mxu0 0.0
    %71 = vmatpush.msra.mxu0 0.0
    %72 = vmatpush.msra.mxu0 0.0
    %73 = vmatpush.msra.mxu0 0.0
    %74 = vmatpush.msra.mxu0 0.0
    %75 = vmatpush.msra.mxu0 0.0
    %76 = vmatpush.msra.mxu0 %v52
    %77 = vmatpush.msra.mxu0 %v51
    %78 = vmatpush.msra.mxu0 %v50
    %79 = vmatpush.msra.mxu0 %v49
    %80 = vmatmul.f32.gmra.mxu0 %v59
    %v81 = vpop.f32.mrf.mxu0
    %v82 = vadd.f32 %v55, %v81
    %83 = vmatmul.f32.gmra.mxu0 %v62
    %v84 = vpop.f32.mrf.mxu0
    %v85 = vadd.f32 %v55, %v84
    %86 = vdwg.mxu0
    %87 = vst [vmem:[#allocation7] sm:$0xff] %v82
    %88 = vst [vmem:[#allocation7 + $0x8] sm:$0xff] %v85
    // Predicated region
    $region22: #{tpu_custom_call.1} parent=1 // pred_check
      _
    $region23: #{tpu_custom_call.1} parent=1 // pred_check_branch
      %90 = sbr.rel (0) target = $region25
    $region24: #{tpu_custom_call.1} parent=1 // pred_region
      %92 = vsyncadd [#allocation4], 0
      %s93 = sshll.u32 [#allocation7], 4
      %s94 = int_to_ptr.vmem [resolvable:$true] %s93
      %s95 = sshll.u32 %s3, 4
      %s96 = int_to_ptr.hbm [resolvable:$true] %s95
      %101 = dma.vmem_to_hbm [thread:$0]  %s94, 256, %s96, [#allocation4], 128, 128, 8
    $region25: #{tpu_custom_call.1} parent=1 // pred_fallthru
      _
    // Predicated region
    $region26: #{tpu_custom_call.1} parent=1 // pred_check
      _
    $region27: #{tpu_custom_call.1} parent=1 // pred_check_branch
      %103 = sbr.rel (0) target = $region29
    $region28: #{tpu_custom_call.1} parent=1 // pred_region
      %105 = dma.done [#allocation4], 256
    $region29: #{tpu_custom_call.1} parent=1 // pred_fallthru
      _
    %106 = vsyncpa [#allocation3], 1
    %107 = vsyncpa [#allocation6], 1
    %108 = vsyncpa [#allocation4], 1

</llo_original>
